<compile_context>
chip_gen: v7x
topology: tpu7x:2x2x1
jax: 0.10.0
libtpu: 0.0.40
codegen_flags: <defaults>
</compile_context>

<pallas_src>
import jax
import jax.numpy as jnp
from jax.experimental import pallas as pl
from jax.experimental.pallas import tpu as pltpu


def _fused_hgnn_kernel(x_ref, a_ref, cflat_ref, wct_ref, bct_ref, out_ref):
    # x_ref:     [TB, K]    frame features (K = N*C0), batch on sublanes (contiguous tile)
    # a_ref:     [NH2, K]   fused (G@G) (x) (W1@W2)^T operator (bf16 by default)
    # cflat_ref: [NH2, 1]   fused bias/propagation constant (f32)
    # wct_ref:   [CLS, H2]  classifier weight, transposed (f32)
    # bct_ref:   [CLS, 1]   classifier bias (f32)
    # out_ref:   [CLS, TB]  lane-dense (batch on lanes) output tile
    tb = x_ref.shape[0]
    h2 = wct_ref.shape[1]
    n_nodes = a_ref.shape[0] // h2

    # In-kernel downcast (VPU) + implicit reorientation (XLU) of the x tile keeps
    # the HBM-side x DMA fully contiguous and the big matmul at native bf16 rate.
    xt = x_ref[...].astype(a_ref.dtype)

    # (1) Entire fused two-layer HGNN stack as one wide matmul, batch on lanes.
    q = jax.lax.dot_general(
        a_ref[...], xt,
        dimension_numbers=(((1,), (1,)), ((), ())),
        preferred_element_type=jnp.float32,
    ) + cflat_ref[...]                                             # [NH2, TB] f32

    # (2) Max over the graph-node axis (leading-dim split keeps the lane dim).
    pooled = jnp.max(q.reshape(n_nodes, h2, tb), axis=0)           # [H2, TB] f32

    # (3) Classifier head on f32 operands (tiny; avoids re-rounding pooled).
    out = jnp.dot(wct_ref[...], pooled,
                  preferred_element_type=jnp.float32) + bct_ref[...]   # [CLS, TB]
    out_ref[...] = out.astype(out_ref.dtype)


def prepare_frame_wise_hgnn(G, params, *, compute_dtype=jnp.bfloat16):
    """Build the fused operator once per parameter set (cache & reuse).

    compute_dtype: streaming dtype for the large matmul operand A (and the x tile
    inside the kernel).  Default bf16 (full-rate MXU, ~1e-2 accuracy); pass None
    for an exact float32 path.
    """
    f32 = jnp.float32
    G = G.astype(f32)
    w1, b1 = params["w1"].astype(f32), params["b1"].astype(f32)
    w2, b2 = params["w2"].astype(f32), params["b2"].astype(f32)
    wc, bc = params["wc"].astype(f32), params["bc"].astype(f32)
    N = G.shape[0]
    C0 = w1.shape[0]
    H2 = w2.shape[1]
    CLS = wc.shape[1]

    # ---- Algebraic fusion of the two bias-affine HGNN_conv layers -----------
    # TODO(synk): revert this fusion if an activation is ever inserted between layers.
    gsq = G @ G                                                    # [N, N]
    wf = w1 @ w2                                                   # [C0, H2]
    ones = jnp.ones((N, 1), dtype=f32)
    cmat = G @ ((G @ (ones @ b1)) @ w2 + ones @ b2)                # [N, H2]

    # Kronecker fold:  A[(n,h),(m,c)] = gsq[n,m] * wf[c,h]
    a_mat = jnp.einsum("nm,ch->nhmc", gsq, wf).reshape(N * H2, N * C0)
    cflat = cmat.reshape(N * H2, 1)                                # stays f32
    wct = wc.T                                                     # [CLS, H2], stays f32
    bct = bc.reshape(CLS, 1)                                       # stays f32

    if compute_dtype is not None:
        a_mat = a_mat.astype(compute_dtype)
    return {"a": a_mat, "cflat": cflat, "wct": wct, "bct": bct,
            "n": N, "c0": C0, "h2": H2, "cls": CLS}


def frame_wise_hgnn_apply(x, fused, *, batch_tile=2048):
    """x: [B, N, C0] float32 (bf16 also accepted). Returns [B, CLS] float32."""
    B, N, C0 = x.shape
    a_mat, cflat, wct, bct = fused["a"], fused["cflat"], fused["wct"], fused["bct"]
    NH2, K = a_mat.shape
    H2, CLS = fused["h2"], fused["cls"]
    assert (N, C0) == (fused["n"], fused["c0"]), "x does not match fused operator"

    # Free, contiguous reshape (rows ordered (node, channel)); no transpose pass.
    x2d = x.reshape(B, K)

    # ---- Batch tile selection ------------------------------------------------
    #  * even split across steps bounds tail-padding waste to <128 elements,
    #  * >=2 steps for B>256 so the "parallel" axis can shard over both v7x TCs,
    #  * lane-dim tiles are multiples of 128; TB<=batch_tile keeps VMEM use a few
    #    MiB (safe for v7x's 32 MiB default scoped limit) -> no override needed.
    if B <= 256:
        tb = B                                       # single block spans the batch
    else:
        steps = max(pl.cdiv(B, batch_tile), 2)
        tb = 128 * pl.cdiv(pl.cdiv(B, steps), 128)
    grid = (pl.cdiv(B, tb),)                         # ragged tail handled by Pallas masking

    out_t = pl.pallas_call(
        _fused_hgnn_kernel,
        out_shape=jax.ShapeDtypeStruct((CLS, B), jnp.float32),
        grid_spec=pltpu.PrefetchScalarGridSpec(
            num_scalar_prefetch=0,
            grid=grid,
            in_specs=[
                pl.BlockSpec((tb, K), lambda b: (b, 0)),       # x tile (contiguous stream)
                pl.BlockSpec((NH2, K), lambda b: (0, 0)),      # fused operator A (resident)
                pl.BlockSpec((NH2, 1), lambda b: (0, 0)),      # fused constant C
                pl.BlockSpec((CLS, H2), lambda b: (0, 0)),     # Wc^T
                pl.BlockSpec((CLS, 1), lambda b: (0, 0)),      # bc^T
            ],
            out_specs=pl.BlockSpec((CLS, tb), lambda b: (0, b)),   # lane-dense store
        ),
        compiler_params=pltpu.CompilerParams(
            dimension_semantics=("parallel",)),
    )(x2d, a_mat, cflat, wct, bct)

    return out_t.T                                   # [B, CLS]


def frame_wise_hgnn(x, G, params, *, batch_tile=2048, compute_dtype=jnp.bfloat16):
    """Convenience one-shot wrapper (prefer prepare_... + apply to cache the operator)."""
    fused = prepare_frame_wise_hgnn(G, params, compute_dtype=compute_dtype)
    return frame_wise_hgnn_apply(x, fused, batch_tile=batch_tile)


def _reference(x, G, params):
    h = x @ params["w1"] + params["b1"]                 # [B, N, H1]
    h = jnp.einsum("nm,bmf->bnf", G, h)
    h = h @ params["w2"] + params["b2"]                 # [B, N, H2]
    h = jnp.einsum("nm,bmf->bnf", G, h)
    pooled = jnp.max(h, axis=1)                         # [B, H2]
    return pooled @ params["wc"] + params["bc"]         # [B, CLS]


def _make_inputs(key, B, N, hids, class_num):
    kx, kg, k1, k2, k3, kb1, kb2, kb3 = jax.random.split(key, 8)
    x = jax.random.normal(kx, (B, N, hids[0]), dtype=jnp.float32)
    G = jax.random.normal(kg, (N, N), dtype=jnp.float32) * 0.1
    params = {
        "w1": jax.random.normal(k1, (hids[0], hids[1]), dtype=jnp.float32) * 0.2,
        "b1": jax.random.normal(kb1, (1, hids[1]), dtype=jnp.float32) * 0.1,
        "w2": jax.random.normal(k2, (hids[1], hids[2]), dtype=jnp.float32) * 0.2,
        "b2": jax.random.normal(kb2, (1, hids[2]), dtype=jnp.float32) * 0.1,
        # nn.Linear(hids[-1], class_num): stored as [in, out] (transposed vs torch)
        "wc": jax.random.normal(k3, (hids[2], class_num), dtype=jnp.float32) * 0.2,
        "bc": jax.random.normal(kb3, (1, class_num), dtype=jnp.float32) * 0.1,
    }
    return x, G, params


if __name__ == "__main__":
    hids = [3, 32, 32]
    class_num = 8
    N = 16

    # Case 1: tiny batch, exact f32 path (single grid step; block spans the batch).
    x, G, params = _make_inputs(jax.random.PRNGKey(0), 2, N, hids, class_num)
    out = jax.block_until_ready(frame_wise_hgnn(x, G, params, compute_dtype=None))
    ref = _reference(x, G, params)
    assert out.shape == (2, class_num)
    assert jnp.allclose(out, ref, atol=1e-4, rtol=1e-3), "mismatch vs reference (B=2, f32)"

    # Case 2: multi-step grid (>=2 steps) + ragged tail block, exact f32 path.
    # Tight tolerance validates tail masking / lane isolation of the padded block.
    x2, G2, params2 = _make_inputs(jax.random.PRNGKey(0), 300, N, hids, class_num)
    fused_f32 = prepare_frame_wise_hgnn(G2, params2, compute_dtype=None)   # cached operator
    out2 = jax.block_until_ready(frame_wise_hgnn_apply(x2, fused_f32))
    ref2 = _reference(x2, G2, params2)
    assert out2.shape == (300, class_num)
    assert jnp.allclose(out2, ref2, atol=1e-4, rtol=1e-3), "mismatch vs reference (B=300, f32)"

    # Case 3: default bf16 streaming path (full-rate MXU); looser tolerance.
    fused_bf16 = prepare_frame_wise_hgnn(G2, params2)                      # cached operator
    out3 = jax.block_until_ready(frame_wise_hgnn_apply(x2, fused_bf16))
    assert out3.shape == (300, class_num)
    assert jnp.allclose(out3, ref2, atol=5e-2, rtol=5e-2), "mismatch vs reference (B=300, bf16)"

    print("KERNEL_OK")
</pallas_src>

<mosaic_0001>
module attributes {stable_mosaic.version = 11 : i64} {
  func.func @_fused_hgnn_kernel(%arg0: i32, %arg1: memref<2x48xf32, #tpu.memory_space<vmem>>, %arg2: memref<512x48xf32, #tpu.memory_space<vmem>>, %arg3: memref<512x1xf32, #tpu.memory_space<vmem>>, %arg4: memref<8x32xf32, #tpu.memory_space<vmem>>, %arg5: memref<8x1xf32, #tpu.memory_space<vmem>>, %arg6: memref<8x2xf32, #tpu.memory_space<vmem>>) attributes {dimension_semantics = [#tpu.dimension_semantics<parallel>], iteration_bounds = array<i64: 1>, scalar_prefetch = 0 : i64, scratch_operands = 0 : i64, tpu.core_type = #tpu.core_type<tc>, window_params = [{transform_indices = @transform_0, window_bounds = array<i64: 2, 48>}, {pipeline_mode = #tpu.pipeline_mode<synchronous>, transform_indices = @transform_1, window_bounds = array<i64: 512, 48>}, {pipeline_mode = #tpu.pipeline_mode<synchronous>, transform_indices = @transform_2, window_bounds = array<i64: 512, 1>}, {pipeline_mode = #tpu.pipeline_mode<synchronous>, transform_indices = @transform_3, window_bounds = array<i64: 8, 32>}, {pipeline_mode = #tpu.pipeline_mode<synchronous>, transform_indices = @transform_4, window_bounds = array<i64: 8, 1>}, {transform_indices = @transform_5, window_bounds = array<i64: 8, 2>}]} {
    %c0 = arith.constant 0 : index
    %c0_0 = arith.constant 0 : index
    %0 = vector.load %arg1[%c0, %c0_0] : memref<2x48xf32, #tpu.memory_space<vmem>>, vector<2x48xf32>
    %c0_1 = arith.constant 0 : index
    %c0_2 = arith.constant 0 : index
    %1 = vector.load %arg2[%c0_1, %c0_2] : memref<512x48xf32, #tpu.memory_space<vmem>>, vector<512x48xf32>
    %cst = arith.constant dense<0.000000e+00> : vector<512x2xf32>
    %2 = tpu.matmul %1, %0, %cst {dimension_numbers = #tpu.dot_dimension_numbers<[1], [1], [0], [0], [0, 0, 1, 0], [], []>} : vector<512x48xf32>, vector<2x48xf32>, vector<512x2xf32> -> vector<512x2xf32>
    %c0_3 = arith.constant 0 : index
    %c0_4 = arith.constant 0 : index
    %3 = vector.load %arg3[%c0_3, %c0_4] : memref<512x1xf32, #tpu.memory_space<vmem>>, vector<512x1xf32>
    %4 = vector.broadcast %3 : vector<512x1xf32> to vector<512x2xf32>
    %5 = arith.addf %2, %4 : vector<512x2xf32>
    %6 = vector.shape_cast %5 : vector<512x2xf32> to vector<16x32x2xf32>
    %cst_5 = arith.constant dense<0xFF800000> : vector<32x2xf32>
    %7 = vector.multi_reduction <maximumf>, %6, %cst_5 [0] : vector<16x32x2xf32> to vector<32x2xf32>
    %c0_6 = arith.constant 0 : index
    %c0_7 = arith.constant 0 : index
    %8 = vector.load %arg4[%c0_6, %c0_7] : memref<8x32xf32, #tpu.memory_space<vmem>>, vector<8x32xf32>
    %cst_8 = arith.constant dense<0.000000e+00> : vector<8x2xf32>
    %9 = tpu.matmul %8, %7, %cst_8 {dimension_numbers = #tpu.dot_dimension_numbers<[1], [0], [0], [1], [0, 0, 1, 1], [], []>} : vector<8x32xf32>, vector<32x2xf32>, vector<8x2xf32> -> vector<8x2xf32>
    %c0_9 = arith.constant 0 : index
    %c0_10 = arith.constant 0 : index
    %10 = vector.load %arg5[%c0_9, %c0_10] : memref<8x1xf32, #tpu.memory_space<vmem>>, vector<8x1xf32>
    %11 = vector.broadcast %10 : vector<8x1xf32> to vector<8x2xf32>
    %12 = arith.addf %9, %11 : vector<8x2xf32>
    %c0_11 = arith.constant 0 : index
    %c0_12 = arith.constant 0 : index
    %13 = vector.load %arg6[%c0_11, %c0_12] : memref<8x2xf32, #tpu.memory_space<vmem>>, vector<8x2xf32>
    tpu.vector_store %arg6[%c0_11, %c0_12], %12 {strides = array<i32>} : memref<8x2xf32, #tpu.memory_space<vmem>>, vector<8x2xf32>,
    return
  }
  func.func @transform_0(%arg0: i32) -> (i32, i32) {
    %c0_i32 = arith.constant 0 : i32
    %c0_i32_0 = arith.constant 0 : i32
    return %arg0, %c0_i32 : i32, i32
  }
  func.func @transform_1(%arg0: i32) -> (i32, i32) {
    %c0_i32 = arith.constant 0 : i32
    %c0_i32_0 = arith.constant 0 : i32
    %c0_i32_1 = arith.constant 0 : i32
    return %c0_i32, %c0_i32_0 : i32, i32
  }
  func.func @transform_2(%arg0: i32) -> (i32, i32) {
    %c0_i32 = arith.constant 0 : i32
    %c0_i32_0 = arith.constant 0 : i32
    %c0_i32_1 = arith.constant 0 : i32
    return %c0_i32, %c0_i32_0 : i32, i32
  }
  func.func @transform_3(%arg0: i32) -> (i32, i32) {
    %c0_i32 = arith.constant 0 : i32
    %c0_i32_0 = arith.constant 0 : i32
    %c0_i32_1 = arith.constant 0 : i32
    return %c0_i32, %c0_i32_0 : i32, i32
  }
  func.func @transform_4(%arg0: i32) -> (i32, i32) {
    %c0_i32 = arith.constant 0 : i32
    %c0_i32_0 = arith.constant 0 : i32
    %c0_i32_1 = arith.constant 0 : i32
    return %c0_i32, %c0_i32_0 : i32, i32
  }
  func.func @transform_5(%arg0: i32) -> (i32, i32) {
    %c0_i32 = arith.constant 0 : i32
    %c0_i32_0 = arith.constant 0 : i32
    return %c0_i32, %arg0 : i32, i32
  }
}

</mosaic_0001>

<llo_original>
// kernel: tpu_custom_call.1
$region0: #{tpu_custom_call.1}
  #allocation0 [shape = 'u32[]', space=smem, size = 0x4, offset = 0x4, fixed_abs, tag = 'smem constant byte address 0x4 - core index']
  #allocation1 [shape = 'u32[144,128]{1,0:T(1,128)}', space=vmem, size = 0x12000, scoped, tag = 'internal scratch']
  %s0 = inlined_call_operand.vmem [shape: f32[2,48], index: 0, kind: input, shape index: {}]
  %s1 = inlined_call_operand.vmem [shape: f32[512,48], index: 1, kind: input, shape index: {}]
  %s2 = inlined_call_operand.vmem [shape: f32[512,1], index: 2, kind: input, shape index: {}]
  %s3 = inlined_call_operand.vmem [shape: f32[8,32], index: 3, kind: input, shape index: {}]
  %s4 = inlined_call_operand.vmem [shape: f32[8,1], index: 4, kind: input, shape index: {}]
  %s5 = inlined_call_operand.vmem [shape: f32[8,2], index: 5, kind: output, shape index: {}]
  %s6 = sld [smem:[#allocation0]]
  $region30: #{tpu_custom_call.1} parent=0
    _
  %s8 = ssub.s32 1, %s6
  %s9 = scalar_select 0, %s8, %s6
  // Predicated region
  $region2: #{tpu_custom_call.1} parent=0 // pred_check
    _
  $region3: #{tpu_custom_call.1} parent=0 // pred_check_branch
    %11 = sbr.rel (0) target = $region5
  $region4: #{tpu_custom_call.1} parent=0 // pred_region
    _
  $region5: #{tpu_custom_call.1} parent=0 // pred_fallthru
    _
  // Predicated region
  $region6: #{tpu_custom_call.1} parent=0 // pred_check
    _
  $region7: #{tpu_custom_call.1} parent=0 // pred_check_branch
    %13 = sbr.rel (0) target = $region9
  $region8: #{tpu_custom_call.1} parent=0 // pred_region
    _
  $region9: #{tpu_custom_call.1} parent=0 // pred_fallthru
    _
  // Predicated region
  $region10: #{tpu_custom_call.1} parent=0 // pred_check
    _
  $region11: #{tpu_custom_call.1} parent=0 // pred_check_branch
    %15 = sbr.rel (0) target = $region13
  $region12: #{tpu_custom_call.1} parent=0 // pred_region
    _
  $region13: #{tpu_custom_call.1} parent=0 // pred_fallthru
    _
  // Predicated region
  $region14: #{tpu_custom_call.1} parent=0 // pred_check
    _
  $region15: #{tpu_custom_call.1} parent=0 // pred_check_branch
    %17 = sbr.rel (0) target = $region17
  $region16: #{tpu_custom_call.1} parent=0 // pred_region
    _
  $region17: #{tpu_custom_call.1} parent=0 // pred_fallthru
    _
  // Predicated region
  $region18: #{tpu_custom_call.1} parent=0 // pred_check
    _
  $region19: #{tpu_custom_call.1} parent=0 // pred_check_branch
    %19 = sbr.rel (0) target = $region21
  $region20: #{tpu_custom_call.1} parent=0 // pred_region
    _
  $region21: #{tpu_custom_call.1} parent=0 // pred_fallthru
    _
  %v20 = vld [vmem:[%s0] sm:$0x3]
  %v21 = vld [vmem:[%s1] sm:$0xff]
  %v22 = vld [vmem:[%s1 + $0x8] sm:$0xff]
  %v23 = vld [vmem:[%s1 + $0x10] sm:$0xff]
  %v24 = vld [vmem:[%s1 + $0x18] sm:$0xff]
  %v25 = vld [vmem:[%s1 + $0x20] sm:$0xff]
  %v26 = vld [vmem:[%s1 + $0x28] sm:$0xff]
  %v27 = vld [vmem:[%s1 + $0x30] sm:$0xff]
  %v28 = vld [vmem:[%s1 + $0x38] sm:$0xff]
  %v29 = vld [vmem:[%s1 + $0x40] sm:$0xff]
  %v30 = vld [vmem:[%s1 + $0x48] sm:$0xff]
  %v31 = vld [vmem:[%s1 + $0x50] sm:$0xff]
  %v32 = vld [vmem:[%s1 + $0x58] sm:$0xff]
  %v33 = vld [vmem:[%s1 + $0x60] sm:$0xff]
  %v34 = vld [vmem:[%s1 + $0x68] sm:$0xff]
  %v35 = vld [vmem:[%s1 + $0x70] sm:$0xff]
  %v36 = vld [vmem:[%s1 + $0x78] sm:$0xff]
  %v37 = vld [vmem:[%s1 + $0x80] sm:$0xff]
  %v38 = vld [vmem:[%s1 + $0x88] sm:$0xff]
  %v39 = vld [vmem:[%s1 + $0x90] sm:$0xff]
  %v40 = vld [vmem:[%s1 + $0x98] sm:$0xff]
  %v41 = vld [vmem:[%s1 + $0xa0] sm:$0xff]
  %v42 = vld [vmem:[%s1 + $0xa8] sm:$0xff]
  %v43 = vld [vmem:[%s1 + $0xb0] sm:$0xff]
  %v44 = vld [vmem:[%s1 + $0xb8] sm:$0xff]
  %v45 = vld [vmem:[%s1 + $0xc0] sm:$0xff]
  %v46 = vld [vmem:[%s1 + $0xc8] sm:$0xff]
  %v47 = vld [vmem:[%s1 + $0xd0] sm:$0xff]
  %v48 = vld [vmem:[%s1 + $0xd8] sm:$0xff]
  %v49 = vld [vmem:[%s1 + $0xe0] sm:$0xff]
  %v50 = vld [vmem:[%s1 + $0xe8] sm:$0xff]
  %v51 = vld [vmem:[%s1 + $0xf0] sm:$0xff]
  %v52 = vld [vmem:[%s1 + $0xf8] sm:$0xff]
  %v53 = vld [vmem:[%s1 + $0x100] sm:$0xff]
  %v54 = vld [vmem:[%s1 + $0x108] sm:$0xff]
  %v55 = vld [vmem:[%s1 + $0x110] sm:$0xff]
  %v56 = vld [vmem:[%s1 + $0x118] sm:$0xff]
  %v57 = vld [vmem:[%s1 + $0x120] sm:$0xff]
  %v58 = vld [vmem:[%s1 + $0x128] sm:$0xff]
  %v59 = vld [vmem:[%s1 + $0x130] sm:$0xff]
  %v60 = vld [vmem:[%s1 + $0x138] sm:$0xff]
  %v61 = vld [vmem:[%s1 + $0x140] sm:$0xff]
  %v62 = vld [vmem:[%s1 + $0x148] sm:$0xff]
  %v63 = vld [vmem:[%s1 + $0x150] sm:$0xff]
  %v64 = vld [vmem:[%s1 + $0x158] sm:$0xff]
  %v65 = vld [vmem:[%s1 + $0x160] sm:$0xff]
  %v66 = vld [vmem:[%s1 + $0x168] sm:$0xff]
  %v67 = vld [vmem:[%s1 + $0x170] sm:$0xff]
  %v68 = vld [vmem:[%s1 + $0x178] sm:$0xff]
  %v69 = vld [vmem:[%s1 + $0x180] sm:$0xff]
  %v70 = vld [vmem:[%s1 + $0x188] sm:$0xff]
  %v71 = vld [vmem:[%s1 + $0x190] sm:$0xff]
  %v72 = vld [vmem:[%s1 + $0x198] sm:$0xff]
  %v73 = vld [vmem:[%s1 + $0x1a0] sm:$0xff]
  %v74 = vld [vmem:[%s1 + $0x1a8] sm:$0xff]
  %v75 = vld [vmem:[%s1 + $0x1b0] sm:$0xff]
  %v76 = vld [vmem:[%s1 + $0x1b8] sm:$0xff]
  %v77 = vld [vmem:[%s1 + $0x1c0] sm:$0xff]
  %v78 = vld [vmem:[%s1 + $0x1c8] sm:$0xff]
  %v79 = vld [vmem:[%s1 + $0x1d0] sm:$0xff]
  %v80 = vld [vmem:[%s1 + $0x1d8] sm:$0xff]
  %v81 = vld [vmem:[%s1 + $0x1e0] sm:$0xff]
  %v82 = vld [vmem:[%s1 + $0x1e8] sm:$0xff]
  %v83 = vld [vmem:[%s1 + $0x1f0] sm:$0xff]
  %v84 = vld [vmem:[%s1 + $0x1f8] sm:$0xff]
  %v85 = vld [vmem:[%s2] sm:$0xff]
  %v86 = vld [vmem:[%s2 + $0x8] sm:$0xff]
  %v87 = vld [vmem:[%s2 + $0x10] sm:$0xff]
  %v88 = vld [vmem:[%s2 + $0x18] sm:$0xff]
  %v89 = vld [vmem:[%s2 + $0x20] sm:$0xff]
  %v90 = vld [vmem:[%s2 + $0x28] sm:$0xff]
  %v91 = vld [vmem:[%s2 + $0x30] sm:$0xff]
  %v92 = vld [vmem:[%s2 + $0x38] sm:$0xff]
  %v93 = vld [vmem:[%s2 + $0x40] sm:$0xff]
  %v94 = vld [vmem:[%s2 + $0x48] sm:$0xff]
  %v95 = vld [vmem:[%s2 + $0x50] sm:$0xff]
  %v96 = vld [vmem:[%s2 + $0x58] sm:$0xff]
  %v97 = vld [vmem:[%s2 + $0x60] sm:$0xff]
  %v98 = vld [vmem:[%s2 + $0x68] sm:$0xff]
  %v99 = vld [vmem:[%s2 + $0x70] sm:$0xff]
  %v100 = vld [vmem:[%s2 + $0x78] sm:$0xff]
  %v101 = vld [vmem:[%s2 + $0x80] sm:$0xff]
  %v102 = vld [vmem:[%s2 + $0x88] sm:$0xff]
  %v103 = vld [vmem:[%s2 + $0x90] sm:$0xff]
  %v104 = vld [vmem:[%s2 + $0x98] sm:$0xff]
  %v105 = vld [vmem:[%s2 + $0xa0] sm:$0xff]
  %v106 = vld [vmem:[%s2 + $0xa8] sm:$0xff]
  %v107 = vld [vmem:[%s2 + $0xb0] sm:$0xff]
  %v108 = vld [vmem:[%s2 + $0xb8] sm:$0xff]
  %v109 = vld [vmem:[%s2 + $0xc0] sm:$0xff]
  %v110 = vld [vmem:[%s2 + $0xc8] sm:$0xff]
  %v111 = vld [vmem:[%s2 + $0xd0] sm:$0xff]
  %v112 = vld [vmem:[%s2 + $0xd8] sm:$0xff]
  %v113 = vld [vmem:[%s2 + $0xe0] sm:$0xff]
  %v114 = vld [vmem:[%s2 + $0xe8] sm:$0xff]
  %v115 = vld [vmem:[%s2 + $0xf0] sm:$0xff]
  %v116 = vld [vmem:[%s2 + $0xf8] sm:$0xff]
  %v117 = vld [vmem:[%s2 + $0x100] sm:$0xff]
  %v118 = vld [vmem:[%s2 + $0x108] sm:$0xff]
  %v119 = vld [vmem:[%s2 + $0x110] sm:$0xff]
  %v120 = vld [vmem:[%s2 + $0x118] sm:$0xff]
  %v121 = vld [vmem:[%s2 + $0x120] sm:$0xff]
  %v122 = vld [vmem:[%s2 + $0x128] sm:$0xff]
  %v123 = vld [vmem:[%s2 + $0x130] sm:$0xff]
  %v124 = vld [vmem:[%s2 + $0x138] sm:$0xff]
  %v125 = vld [vmem:[%s2 + $0x140] sm:$0xff]
  %v126 = vld [vmem:[%s2 + $0x148] sm:$0xff]
  %v127 = vld [vmem:[%s2 + $0x150] sm:$0xff]
  %v128 = vld [vmem:[%s2 + $0x158] sm:$0xff]
  %v129 = vld [vmem:[%s2 + $0x160] sm:$0xff]
  %v130 = vld [vmem:[%s2 + $0x168] sm:$0xff]
  %v131 = vld [vmem:[%s2 + $0x170] sm:$0xff]
  %v132 = vld [vmem:[%s2 + $0x178] sm:$0xff]
  %v133 = vld [vmem:[%s2 + $0x180] sm:$0xff]
  %v134 = vld [vmem:[%s2 + $0x188] sm:$0xff]
  %v135 = vld [vmem:[%s2 + $0x190] sm:$0xff]
  %v136 = vld [vmem:[%s2 + $0x198] sm:$0xff]
  %v137 = vld [vmem:[%s2 + $0x1a0] sm:$0xff]
  %v138 = vld [vmem:[%s2 + $0x1a8] sm:$0xff]
  %v139 = vld [vmem:[%s2 + $0x1b0] sm:$0xff]
  %v140 = vld [vmem:[%s2 + $0x1b8] sm:$0xff]
  %v141 = vld [vmem:[%s2 + $0x1c0] sm:$0xff]
  %v142 = vld [vmem:[%s2 + $0x1c8] sm:$0xff]
  %v143 = vld [vmem:[%s2 + $0x1d0] sm:$0xff]
  %v144 = vld [vmem:[%s2 + $0x1d8] sm:$0xff]
  %v145 = vld [vmem:[%s2 + $0x1e0] sm:$0xff]
  %v146 = vld [vmem:[%s2 + $0x1e8] sm:$0xff]
  %v147 = vld [vmem:[%s2 + $0x1f0] sm:$0xff]
  %v148 = vld [vmem:[%s2 + $0x1f8] sm:$0xff]
  %150 = vset.pattern.permute.xlu0 0
  %151 = vperm.xlu0 %150, %v85
  %v152 = vpop.permute.xlu0 %151
  %155 = vset.pattern.permute.xlu0 0
  %156 = vperm.xlu0 %155, %v86
  %v157 = vpop.permute.xlu0 %156
  %160 = vset.pattern.permute.xlu0 0
  %161 = vperm.xlu0 %160, %v87
  %v162 = vpop.permute.xlu0 %161
  %165 = vset.pattern.permute.xlu0 0
  %166 = vperm.xlu0 %165, %v88
  %v167 = vpop.permute.xlu0 %166
  %170 = vset.pattern.permute.xlu0 0
  %171 = vperm.xlu0 %170, %v89
  %v172 = vpop.permute.xlu0 %171
  %175 = vset.pattern.permute.xlu0 0
  %176 = vperm.xlu0 %175, %v90
  %v177 = vpop.permute.xlu0 %176
  %180 = vset.pattern.permute.xlu0 0
  %181 = vperm.xlu0 %180, %v91
  %v182 = vpop.permute.xlu0 %181
  %185 = vset.pattern.permute.xlu0 0
  %186 = vperm.xlu0 %185, %v92
  %v187 = vpop.permute.xlu0 %186
  %190 = vset.pattern.permute.xlu0 0
  %191 = vperm.xlu0 %190, %v93
  %v192 = vpop.permute.xlu0 %191
  %195 = vset.pattern.permute.xlu0 0
  %196 = vperm.xlu0 %195, %v94
  %v197 = vpop.permute.xlu0 %196
  %200 = vset.pattern.permute.xlu0 0
  %201 = vperm.xlu0 %200, %v95
  %v202 = vpop.permute.xlu0 %201
  %205 = vset.pattern.permute.xlu0 0
  %206 = vperm.xlu0 %205, %v96
  %v207 = vpop.permute.xlu0 %206
  %210 = vset.pattern.permute.xlu0 0
  %211 = vperm.xlu0 %210, %v97
  %v212 = vpop.permute.xlu0 %211
  %215 = vset.pattern.permute.xlu0 0
  %216 = vperm.xlu0 %215, %v98
  %v217 = vpop.permute.xlu0 %216
  %220 = vset.pattern.permute.xlu0 0
  %221 = vperm.xlu0 %220, %v99
  %v222 = vpop.permute.xlu0 %221
  %225 = vset.pattern.permute.xlu0 0
  %226 = vperm.xlu0 %225, %v100
  %v227 = vpop.permute.xlu0 %226
  %230 = vset.pattern.permute.xlu0 0
  %231 = vperm.xlu0 %230, %v101
  %v232 = vpop.permute.xlu0 %231
  %235 = vset.pattern.permute.xlu0 0
  %236 = vperm.xlu0 %235, %v102
  %v237 = vpop.permute.xlu0 %236
  %240 = vset.pattern.permute.xlu0 0
  %241 = vperm.xlu0 %240, %v103
  %v242 = vpop.permute.xlu0 %241
  %245 = vset.pattern.permute.xlu0 0
  %246 = vperm.xlu0 %245, %v104
  %v247 = vpop.permute.xlu0 %246
  %250 = vset.pattern.permute.xlu0 0
  %251 = vperm.xlu0 %250, %v105
  %v252 = vpop.permute.xlu0 %251
  %255 = vset.pattern.permute.xlu0 0
  %256 = vperm.xlu0 %255, %v106
  %v257 = vpop.permute.xlu0 %256
  %260 = vset.pattern.permute.xlu0 0
  %261 = vperm.xlu0 %260, %v107
  %v262 = vpop.permute.xlu0 %261
  %265 = vset.pattern.permute.xlu0 0
  %266 = vperm.xlu0 %265, %v108
  %v267 = vpop.permute.xlu0 %266
  %270 = vset.pattern.permute.xlu0 0
  %271 = vperm.xlu0 %270, %v109
  %v272 = vpop.permute.xlu0 %271
  %275 = vset.pattern.permute.xlu0 0
  %276 = vperm.xlu0 %275, %v110
  %v277 = vpop.permute.xlu0 %276
  %280 = vset.pattern.permute.xlu0 0
  %281 = vperm.xlu0 %280, %v111
  %v282 = vpop.permute.xlu0 %281
  %285 = vset.pattern.permute.xlu0 0
  %286 = vperm.xlu0 %285, %v112
  %v287 = vpop.permute.xlu0 %286
  %290 = vset.pattern.permute.xlu0 0
  %291 = vperm.xlu0 %290, %v113
  %v292 = vpop.permute.xlu0 %291
  %295 = vset.pattern.permute.xlu0 0
  %296 = vperm.xlu0 %295, %v114
  %v297 = vpop.permute.xlu0 %296
  %300 = vset.pattern.permute.xlu0 0
  %301 = vperm.xlu0 %300, %v115
  %v302 = vpop.permute.xlu0 %301
  %305 = vset.pattern.permute.xlu0 0
  %306 = vperm.xlu0 %305, %v116
  %v307 = vpop.permute.xlu0 %306
  %310 = vset.pattern.permute.xlu0 0
  %311 = vperm.xlu0 %310, %v117
  %v312 = vpop.permute.xlu0 %311
  %315 = vset.pattern.permute.xlu0 0
  %316 = vperm.xlu0 %315, %v118
  %v317 = vpop.permute.xlu0 %316
  %320 = vset.pattern.permute.xlu0 0
  %321 = vperm.xlu0 %320, %v119
  %v322 = vpop.permute.xlu0 %321
  %325 = vset.pattern.permute.xlu0 0
  %326 = vperm.xlu0 %325, %v120
  %v327 = vpop.permute.xlu0 %326
  %330 = vset.pattern.permute.xlu0 0
  %331 = vperm.xlu0 %330, %v121
  %v332 = vpop.permute.xlu0 %331
  %335 = vset.pattern.permute.xlu0 0
  %336 = vperm.xlu0 %335, %v122
  %v337 = vpop.permute.xlu0 %336
  %340 = vset.pattern.permute.xlu0 0
  %341 = vperm.xlu0 %340, %v123
  %v342 = vpop.permute.xlu0 %341
  %345 = vset.pattern.permute.xlu0 0
  %346 = vperm.xlu0 %345, %v124
  %v347 = vpop.permute.xlu0 %346
  %350 = vset.pattern.permute.xlu0 0
  %351 = vperm.xlu0 %350, %v125
  %v352 = vpop.permute.xlu0 %351
  %355 = vset.pattern.permute.xlu0 0
  %356 = vperm.xlu0 %355, %v126
  %v357 = vpop.permute.xlu0 %356
  %360 = vset.pattern.permute.xlu0 0
  %361 = vperm.xlu0 %360, %v127
  %v362 = vpop.permute.xlu0 %361
  %365 = vset.pattern.permute.xlu0 0
  %366 = vperm.xlu0 %365, %v128
  %v367 = vpop.permute.xlu0 %366
  %370 = vset.pattern.permute.xlu0 0
  %371 = vperm.xlu0 %370, %v129
  %v372 = vpop.permute.xlu0 %371
  %375 = vset.pattern.permute.xlu0 0
  %376 = vperm.xlu0 %375, %v130
  %v377 = vpop.permute.xlu0 %376
  %380 = vset.pattern.permute.xlu0 0
  %381 = vperm.xlu0 %380, %v131
  %v382 = vpop.permute.xlu0 %381
  %385 = vset.pattern.permute.xlu0 0
  %386 = vperm.xlu0 %385, %v132
  %v387 = vpop.permute.xlu0 %386
  %390 = vset.pattern.permute.xlu0 0
  %391 = vperm.xlu0 %390, %v133
  %v392 = vpop.permute.xlu0 %391
  %395 = vset.pattern.permute.xlu0 0
  %396 = vperm.xlu0 %395, %v134
  %v397 = vpop.permute.xlu0 %396
  %400 = vset.pattern.permute.xlu0 0
  %401 = vperm.xlu0 %400, %v135
  %v402 = vpop.permute.xlu0 %401
  %405 = vset.pattern.permute.xlu0 0
  %406 = vperm.xlu0 %405, %v136
  %v407 = vpop.permute.xlu0 %406
  %410 = vset.pattern.permute.xlu0 0
  %411 = vperm.xlu0 %410, %v137
  %v412 = vpop.permute.xlu0 %411
  %415 = vset.pattern.permute.xlu0 0
  %416 = vperm.xlu0 %415, %v138
  %v417 = vpop.permute.xlu0 %416
  %420 = vset.pattern.permute.xlu0 0
  %421 = vperm.xlu0 %420, %v139
  %v422 = vpop.permute.xlu0 %421
  %425 = vset.pattern.permute.xlu0 0
  %426 = vperm.xlu0 %425, %v140
  %v427 = vpop.permute.xlu0 %426
  %430 = vset.pattern.permute.xlu0 0
  %431 = vperm.xlu0 %430, %v141
  %v432 = vpop.permute.xlu0 %431
  %435 = vset.pattern.permute.xlu0 0
  %436 = vperm.xlu0 %435, %v142
  %v437 = vpop.permute.xlu0 %436
  %440 = vset.pattern.permute.xlu0 0
  %441 = vperm.xlu0 %440, %v143
  %v442 = vpop.permute.xlu0 %441
  %445 = vset.pattern.permute.xlu0 0
  %446 = vperm.xlu0 %445, %v144
  %v447 = vpop.permute.xlu0 %446
  %450 = vset.pattern.permute.xlu0 0
  %451 = vperm.xlu0 %450, %v145
  %v452 = vpop.permute.xlu0 %451
  %455 = vset.pattern.permute.xlu0 0
  %456 = vperm.xlu0 %455, %v146
  %v457 = vpop.permute.xlu0 %456
  %460 = vset.pattern.permute.xlu0 0
  %461 = vperm.xlu0 %460, %v147
  %v462 = vpop.permute.xlu0 %461
  %465 = vset.pattern.permute.xlu0 0
  %466 = vperm.xlu0 %465, %v148
  %v467 = vpop.permute.xlu0 %466
  %vm469 = vcmask 392192
  %v471 = vsel %vm469, %v21, 0
  %v474 = vsel %vm469, %v22, 0
  %v477 = vsel %vm469, %v23, 0
  %v480 = vsel %vm469, %v24, 0
  %v483 = vsel %vm469, %v25, 0
  %v486 = vsel %vm469, %v26, 0
  %v489 = vsel %vm469, %v27, 0
  %v492 = vsel %vm469, %v28, 0
  %v495 = vsel %vm469, %v29, 0
  %v498 = vsel %vm469, %v30, 0
  %v501 = vsel %vm469, %v31, 0
  %v504 = vsel %vm469, %v32, 0
  %v507 = vsel %vm469, %v33, 0
  %v510 = vsel %vm469, %v34, 0
  %v513 = vsel %vm469, %v35, 0
  %v516 = vsel %vm469, %v36, 0
  %v519 = vsel %vm469, %v37, 0
  %v522 = vsel %vm469, %v38, 0
  %v525 = vsel %vm469, %v39, 0
  %v528 = vsel %vm469, %v40, 0
  %v531 = vsel %vm469, %v41, 0
  %v534 = vsel %vm469, %v42, 0
  %v537 = vsel %vm469, %v43, 0
  %v540 = vsel %vm469, %v44, 0
  %v543 = vsel %vm469, %v45, 0
  %v546 = vsel %vm469, %v46, 0
  %v549 = vsel %vm469, %v47, 0
  %v552 = vsel %vm469, %v48, 0
  %v555 = vsel %vm469, %v49, 0
  %v558 = vsel %vm469, %v50, 0
  %v561 = vsel %vm469, %v51, 0
  %v564 = vsel %vm469, %v52, 0
  %v567 = vsel %vm469, %v53, 0
  %v570 = vsel %vm469, %v54, 0
  %v573 = vsel %vm469, %v55, 0
  %v576 = vsel %vm469, %v56, 0
  %v579 = vsel %vm469, %v57, 0
  %v582 = vsel %vm469, %v58, 0
  %v585 = vsel %vm469, %v59, 0
  %v588 = vsel %vm469, %v60, 0
  %v591 = vsel %vm469, %v61, 0
  %v594 = vsel %vm469, %v62, 0
  %v597 = vsel %vm469, %v63, 0
  %v600 = vsel %vm469, %v64, 0
  %v603 = vsel %vm469, %v65, 0
  %v606 = vsel %vm469, %v66, 0
  %v609 = vsel %vm469, %v67, 0
  %v612 = vsel %vm469, %v68, 0
  %v615 = vsel %vm469, %v69, 0
  %v618 = vsel %vm469, %v70, 0
  %v621 = vsel %vm469, %v71, 0
  %v624 = vsel %vm469, %v72, 0
  %v627 = vsel %vm469, %v73, 0
  %v630 = vsel %vm469, %v74, 0
  %v633 = vsel %vm469, %v75, 0
  %v636 = vsel %vm469, %v76, 0
  %v639 = vsel %vm469, %v77, 0
  %v642 = vsel %vm469, %v78, 0
  %v645 = vsel %vm469, %v79, 0
  %v648 = vsel %vm469, %v80, 0
  %v651 = vsel %vm469, %v81, 0
  %v654 = vsel %vm469, %v82, 0
  %v657 = vsel %vm469, %v83, 0
  %v660 = vsel %vm469, %v84, 0
  %v663 = vsel %vm469, %v20, 0
  %665 = vmatprep.subr.mxu0 0.0
  %666 = vmatpush1.xpose.msra.mxu0 %v663
  %667 = vmatprep.subr.mxu0 0.0
  %668 = vmatpush1.xpose.msra.mxu0 0.0
  %669 = vmatprep.subr.mxu0 0.0
  %670 = vmatpush1.xpose.msra.mxu0 0.0
  %671 = vmatprep.subr.mxu0 0.0
  %672 = vmatpush1.xpose.msra.mxu0 0.0
  %673 = vmatprep.subr.mxu0 0.0
  %674 = vmatpush1.xpose.msra.mxu0 0.0
  %675 = vmatprep.subr.mxu0 0.0
  %676 = vmatpush1.xpose.msra.mxu0 0.0
  %677 = vmatprep.subr.mxu0 0.0
  %678 = vmatpush1.xpose.msra.mxu0 0.0
  %679 = vmatprep.subr.mxu0 0.0
  %680 = vmatpush1.xpose.msra.mxu0 0.0
  %681 = vmatprep.subr.mxu0 0.0
  %682 = vmatpush1.xpose.msra.mxu0 0.0
  %683 = vmatprep.subr.mxu0 0.0
  %684 = vmatpush1.xpose.msra.mxu0 0.0
  %685 = vmatprep.subr.mxu0 0.0
  %686 = vmatpush1.xpose.msra.mxu0 0.0
  %687 = vmatprep.subr.mxu0 0.0
  %688 = vmatpush1.xpose.msra.mxu0 0.0
  %689 = vmatprep.subr.mxu0 0.0
  %690 = vmatpush1.xpose.msra.mxu0 0.0
  %691 = vmatprep.subr.mxu0 0.0
  %692 = vmatpush1.xpose.msra.mxu0 0.0
  %693 = vmatprep.subr.mxu0 0.0
  %694 = vmatpush1.xpose.msra.mxu0 0.0
  %695 = vmatprep.subr.mxu0 0.0
  %696 = vmatpush1.xpose.msra.mxu0 0.0
  %697 = vmatprep.subr.mxu0 0.0
  %698 = vmatpush1.xpose.msra.mxu0 0.0
  %699 = vmatprep.subr.mxu0 0.0
  %700 = vmatpush1.xpose.msra.mxu0 0.0
  %701 = vmatprep.subr.mxu0 0.0
  %702 = vmatpush1.xpose.msra.mxu0 0.0
  %703 = vmatprep.subr.mxu0 0.0
  %704 = vmatpush1.xpose.msra.mxu0 0.0
  %705 = vmatprep.subr.mxu0 0.0
  %706 = vmatpush1.xpose.msra.mxu0 0.0
  %707 = vmatprep.subr.mxu0 0.0
  %708 = vmatpush1.xpose.msra.mxu0 0.0
  %709 = vmatprep.subr.mxu0 0.0
  %710 = vmatpush1.xpose.msra.mxu0 0.0
  %711 = vmatprep.subr.mxu0 0.0
  %712 = vmatpush1.xpose.msra.mxu0 0.0
  %713 = vmatprep.subr.mxu0 0.0
  %714 = vmatpush1.xpose.msra.mxu0 0.0
  %715 = vmatprep.subr.mxu0 0.0
  %716 = vmatpush1.xpose.msra.mxu0 0.0
  %717 = vmatprep.subr.mxu0 0.0
  %718 = vmatpush1.xpose.msra.mxu0 0.0
  %719 = vmatprep.subr.mxu0 0.0
  %720 = vmatpush1.xpose.msra.mxu0 0.0
  %721 = vmatprep.subr.mxu0 0.0
  %722 = vmatpush1.xpose.msra.mxu0 0.0
  %723 = vmatprep.subr.mxu0 0.0
  %724 = vmatpush1.xpose.msra.mxu0 0.0
  %725 = vmatprep.subr.mxu0 0.0
  %726 = vmatpush1.xpose.msra.mxu0 0.0
  %727 = vmatprep.subr.mxu0 0.0
  %728 = vmatpush1.xpose.msra.mxu0 0.0
  %729 = vmatprep.mubr.f32.mxu0 0.0
  %730 = vmatmul.mubr.f32.gmra.mrb[0].mxu0 %v471
  %v731 = vpop.f32.mrb[0].mxu0
  %v732 = vadd.f32 %v152, %v731
  %v733 = vpop.f32.mrb[0].mxu0
  %734 = vmatprep.mubr.f32.mxu0 0.0
  %735 = vmatmul.mubr.f32.gmra.mrb[0].mxu0 %v474
  %v736 = vpop.f32.mrb[0].mxu0
  %v737 = vadd.f32 %v157, %v736
  %v738 = vpop.f32.mrb[0].mxu0
  %739 = vmatprep.mubr.f32.mxu0 0.0
  %740 = vmatmul.mubr.f32.gmra.mrb[0].mxu0 %v477
  %v741 = vpop.f32.mrb[0].mxu0
  %v742 = vadd.f32 %v162, %v741
  %v743 = vpop.f32.mrb[0].mxu0
  %744 = vmatprep.mubr.f32.mxu0 0.0
  %745 = vmatmul.mubr.f32.gmra.mrb[0].mxu0 %v480
  %v746 = vpop.f32.mrb[0].mxu0
  %v747 = vadd.f32 %v167, %v746
  %v748 = vpop.f32.mrb[0].mxu0
  %749 = vmatprep.mubr.f32.mxu0 0.0
  %750 = vmatmul.mubr.f32.gmra.mrb[0].mxu0 %v483
  %v751 = vpop.f32.mrb[0].mxu0
  %v752 = vadd.f32 %v172, %v751
  %v753 = vpop.f32.mrb[0].mxu0
  %754 = vmatprep.mubr.f32.mxu0 0.0
  %755 = vmatmul.mubr.f32.gmra.mrb[0].mxu0 %v486
  %v756 = vpop.f32.mrb[0].mxu0
  %v757 = vadd.f32 %v177, %v756
  %v758 = vpop.f32.mrb[0].mxu0
  %759 = vmatprep.mubr.f32.mxu0 0.0
  %760 = vmatmul.mubr.f32.gmra.mrb[0].mxu0 %v489
  %v761 = vpop.f32.mrb[0].mxu0
  %v762 = vadd.f32 %v182, %v761
  %v763 = vpop.f32.mrb[0].mxu0
  %764 = vmatprep.mubr.f32.mxu0 0.0
  %765 = vmatmul.mubr.f32.gmra.mrb[0].mxu0 %v492
  %v766 = vpop.f32.mrb[0].mxu0
  %v767 = vadd.f32 %v187, %v766
  %v768 = vpop.f32.mrb[0].mxu0
  %769 = vmatprep.mubr.f32.mxu0 0.0
  %770 = vmatmul.mubr.f32.gmra.mrb[0].mxu0 %v495
  %v771 = vpop.f32.mrb[0].mxu0
  %v772 = vadd.f32 %v192, %v771
  %v773 = vpop.f32.mrb[0].mxu0
  %774 = vmatprep.mubr.f32.mxu0 0.0
  %775 = vmatmul.mubr.f32.gmra.mrb[0].mxu0 %v498
  %v776 = vpop.f32.mrb[0].mxu0
  %v777 = vadd.f32 %v197, %v776
  %v778 = vpop.f32.mrb[0].mxu0
  %779 = vmatprep.mubr.f32.mxu0 0.0
  %780 = vmatmul.mubr.f32.gmra.mrb[0].mxu0 %v501
  %v781 = vpop.f32.mrb[0].mxu0
  %v782 = vadd.f32 %v202, %v781
  %v783 = vpop.f32.mrb[0].mxu0
  %784 = vmatprep.mubr.f32.mxu0 0.0
  %785 = vmatmul.mubr.f32.gmra.mrb[0].mxu0 %v504
  %v786 = vpop.f32.mrb[0].mxu0
  %v787 = vadd.f32 %v207, %v786
  %v788 = vpop.f32.mrb[0].mxu0
  %789 = vmatprep.mubr.f32.mxu0 0.0
  %790 = vmatmul.mubr.f32.gmra.mrb[0].mxu0 %v507
  %v791 = vpop.f32.mrb[0].mxu0
  %v792 = vadd.f32 %v212, %v791
  %v793 = vpop.f32.mrb[0].mxu0
  %794 = vmatprep.mubr.f32.mxu0 0.0
  %795 = vmatmul.mubr.f32.gmra.mrb[0].mxu0 %v510
  %v796 = vpop.f32.mrb[0].mxu0
  %v797 = vadd.f32 %v217, %v796
  %v798 = vpop.f32.mrb[0].mxu0
  %799 = vmatprep.mubr.f32.mxu0 0.0
  %800 = vmatmul.mubr.f32.gmra.mrb[0].mxu0 %v513
  %v801 = vpop.f32.mrb[0].mxu0
  %v802 = vadd.f32 %v222, %v801
  %v803 = vpop.f32.mrb[0].mxu0
  %804 = vmatprep.mubr.f32.mxu0 0.0
  %805 = vmatmul.mubr.f32.gmra.mrb[0].mxu0 %v516
  %v806 = vpop.f32.mrb[0].mxu0
  %v807 = vadd.f32 %v227, %v806
  %v808 = vpop.f32.mrb[0].mxu0
  %809 = vmatprep.mubr.f32.mxu0 0.0
  %810 = vmatmul.mubr.f32.gmra.mrb[0].mxu0 %v519
  %v811 = vpop.f32.mrb[0].mxu0
  %v812 = vadd.f32 %v232, %v811
  %v813 = vpop.f32.mrb[0].mxu0
  %814 = vmatprep.mubr.f32.mxu0 0.0
  %815 = vmatmul.mubr.f32.gmra.mrb[0].mxu0 %v522
  %v816 = vpop.f32.mrb[0].mxu0
  %v817 = vadd.f32 %v237, %v816
  %v818 = vpop.f32.mrb[0].mxu0
  %819 = vmatprep.mubr.f32.mxu0 0.0
  %820 = vmatmul.mubr.f32.gmra.mrb[0].mxu0 %v525
  %v821 = vpop.f32.mrb[0].mxu0
  %v822 = vadd.f32 %v242, %v821
  %v823 = vpop.f32.mrb[0].mxu0
  %824 = vmatprep.mubr.f32.mxu0 0.0
  %825 = vmatmul.mubr.f32.gmra.mrb[0].mxu0 %v528
  %v826 = vpop.f32.mrb[0].mxu0
  %v827 = vadd.f32 %v247, %v826
  %v828 = vpop.f32.mrb[0].mxu0
  %829 = vmatprep.mubr.f32.mxu0 0.0
  %830 = vmatmul.mubr.f32.gmra.mrb[0].mxu0 %v531
  %v831 = vpop.f32.mrb[0].mxu0
  %v832 = vadd.f32 %v252, %v831
  %v833 = vpop.f32.mrb[0].mxu0
  %834 = vmatprep.mubr.f32.mxu0 0.0
  %835 = vmatmul.mubr.f32.gmra.mrb[0].mxu0 %v534
  %v836 = vpop.f32.mrb[0].mxu0
  %v837 = vadd.f32 %v257, %v836
  %v838 = vpop.f32.mrb[0].mxu0
  %839 = vmatprep.mubr.f32.mxu0 0.0
  %840 = vmatmul.mubr.f32.gmra.mrb[0].mxu0 %v537
  %v841 = vpop.f32.mrb[0].mxu0
  %v842 = vadd.f32 %v262, %v841
  %v843 = vpop.f32.mrb[0].mxu0
  %844 = vmatprep.mubr.f32.mxu0 0.0
  %845 = vmatmul.mubr.f32.gmra.mrb[0].mxu0 %v540
  %v846 = vpop.f32.mrb[0].mxu0
  %v847 = vadd.f32 %v267, %v846
  %v848 = vpop.f32.mrb[0].mxu0
  %849 = vmatprep.mubr.f32.mxu0 0.0
  %850 = vmatmul.mubr.f32.gmra.mrb[0].mxu0 %v543
  %v851 = vpop.f32.mrb[0].mxu0
  %v852 = vadd.f32 %v272, %v851
  %v853 = vpop.f32.mrb[0].mxu0
  %854 = vmatprep.mubr.f32.mxu0 0.0
  %855 = vmatmul.mubr.f32.gmra.mrb[0].mxu0 %v546
  %v856 = vpop.f32.mrb[0].mxu0
  %v857 = vadd.f32 %v277, %v856
  %v858 = vpop.f32.mrb[0].mxu0
  %859 = vmatprep.mubr.f32.mxu0 0.0
  %860 = vmatmul.mubr.f32.gmra.mrb[0].mxu0 %v549
  %v861 = vpop.f32.mrb[0].mxu0
  %v862 = vadd.f32 %v282, %v861
  %v863 = vpop.f32.mrb[0].mxu0
  %864 = vmatprep.mubr.f32.mxu0 0.0
  %865 = vmatmul.mubr.f32.gmra.mrb[0].mxu0 %v552
  %v866 = vpop.f32.mrb[0].mxu0
  %v867 = vadd.f32 %v287, %v866
  %v868 = vpop.f32.mrb[0].mxu0
  %869 = vmatprep.mubr.f32.mxu0 0.0
  %870 = vmatmul.mubr.f32.gmra.mrb[0].mxu0 %v555
  %v871 = vpop.f32.mrb[0].mxu0
  %v872 = vadd.f32 %v292, %v871
  %v873 = vpop.f32.mrb[0].mxu0
  %874 = vmatprep.mubr.f32.mxu0 0.0
  %875 = vmatmul.mubr.f32.gmra.mrb[0].mxu0 %v558
  %v876 = vpop.f32.mrb[0].mxu0
  %v877 = vadd.f32 %v297, %v876
  %v878 = vpop.f32.mrb[0].mxu0
  %879 = vmatprep.mubr.f32.mxu0 0.0
  %880 = vmatmul.mubr.f32.gmra.mrb[0].mxu0 %v561
  %v881 = vpop.f32.mrb[0].mxu0
  %v882 = vadd.f32 %v302, %v881
  %v883 = vpop.f32.mrb[0].mxu0
  %884 = vmatprep.mubr.f32.mxu0 0.0
  %885 = vmatmul.mubr.f32.gmra.mrb[0].mxu0 %v564
  %v886 = vpop.f32.mrb[0].mxu0
  %v887 = vadd.f32 %v307, %v886
  %v888 = vpop.f32.mrb[0].mxu0
  %889 = vmatprep.mubr.f32.mxu0 0.0
  %890 = vmatmul.mubr.f32.gmra.mrb[0].mxu0 %v567
  %v891 = vpop.f32.mrb[0].mxu0
  %v892 = vadd.f32 %v312, %v891
  %v893 = vpop.f32.mrb[0].mxu0
  %894 = vmatprep.mubr.f32.mxu0 0.0
  %895 = vmatmul.mubr.f32.gmra.mrb[0].mxu0 %v570
  %v896 = vpop.f32.mrb[0].mxu0
  %v897 = vadd.f32 %v317, %v896
  %v898 = vpop.f32.mrb[0].mxu0
  %899 = vmatprep.mubr.f32.mxu0 0.0
  %900 = vmatmul.mubr.f32.gmra.mrb[0].mxu0 %v573
  %v901 = vpop.f32.mrb[0].mxu0
  %v902 = vadd.f32 %v322, %v901
  %v903 = vpop.f32.mrb[0].mxu0
  %904 = vmatprep.mubr.f32.mxu0 0.0
  %905 = vmatmul.mubr.f32.gmra.mrb[0].mxu0 %v576
  %v906 = vpop.f32.mrb[0].mxu0
  %v907 = vadd.f32 %v327, %v906
  %v908 = vpop.f32.mrb[0].mxu0
  %909 = vmatprep.mubr.f32.mxu0 0.0
  %910 = vmatmul.mubr.f32.gmra.mrb[0].mxu0 %v579
  %v911 = vpop.f32.mrb[0].mxu0
  %v912 = vadd.f32 %v332, %v911
  %v913 = vpop.f32.mrb[0].mxu0
  %914 = vmatprep.mubr.f32.mxu0 0.0
  %915 = vmatmul.mubr.f32.gmra.mrb[0].mxu0 %v582
  %v916 = vpop.f32.mrb[0].mxu0
  %v917 = vadd.f32 %v337, %v916
  %v918 = vpop.f32.mrb[0].mxu0
  %919 = vmatprep.mubr.f32.mxu0 0.0
  %920 = vmatmul.mubr.f32.gmra.mrb[0].mxu0 %v585
  %v921 = vpop.f32.mrb[0].mxu0
  %v922 = vadd.f32 %v342, %v921
  %v923 = vpop.f32.mrb[0].mxu0
  %924 = vmatprep.mubr.f32.mxu0 0.0
  %925 = vmatmul.mubr.f32.gmra.mrb[0].mxu0 %v588
  %v926 = vpop.f32.mrb[0].mxu0
  %v927 = vadd.f32 %v347, %v926
  %v928 = vpop.f32.mrb[0].mxu0
  %929 = vmatprep.mubr.f32.mxu0 0.0
  %930 = vmatmul.mubr.f32.gmra.mrb[0].mxu0 %v591
  %v931 = vpop.f32.mrb[0].mxu0
  %v932 = vadd.f32 %v352, %v931
  %v933 = vpop.f32.mrb[0].mxu0
  %934 = vmatprep.mubr.f32.mxu0 0.0
  %935 = vmatmul.mubr.f32.gmra.mrb[0].mxu0 %v594
  %v936 = vpop.f32.mrb[0].mxu0
  %v937 = vadd.f32 %v357, %v936
  %v938 = vpop.f32.mrb[0].mxu0
  %939 = vmatprep.mubr.f32.mxu0 0.0
  %940 = vmatmul.mubr.f32.gmra.mrb[0].mxu0 %v597
  %v941 = vpop.f32.mrb[0].mxu0
  %v942 = vadd.f32 %v362, %v941
  %v943 = vpop.f32.mrb[0].mxu0
  %944 = vmatprep.mubr.f32.mxu0 0.0
  %945 = vmatmul.mubr.f32.gmra.mrb[0].mxu0 %v600
  %v946 = vpop.f32.mrb[0].mxu0
  %v947 = vadd.f32 %v367, %v946
  %v948 = vpop.f32.mrb[0].mxu0
  %949 = vmatprep.mubr.f32.mxu0 0.0
  %950 = vmatmul.mubr.f32.gmra.mrb[0].mxu0 %v603
  %v951 = vpop.f32.mrb[0].mxu0
  %v952 = vadd.f32 %v372, %v951
  %v953 = vpop.f32.mrb[0].mxu0
  %954 = vmatprep.mubr.f32.mxu0 0.0
  %955 = vmatmul.mubr.f32.gmra.mrb[0].mxu0 %v606
  %v956 = vpop.f32.mrb[0].mxu0
  %v957 = vadd.f32 %v377, %v956
  %v958 = vpop.f32.mrb[0].mxu0
  %959 = vmatprep.mubr.f32.mxu0 0.0
  %960 = vmatmul.mubr.f32.gmra.mrb[0].mxu0 %v609
  %v961 = vpop.f32.mrb[0].mxu0
  %v962 = vadd.f32 %v382, %v961
  %v963 = vpop.f32.mrb[0].mxu0
  %964 = vmatprep.mubr.f32.mxu0 0.0
  %965 = vmatmul.mubr.f32.gmra.mrb[0].mxu0 %v612
  %v966 = vpop.f32.mrb[0].mxu0
  %v967 = vadd.f32 %v387, %v966
  %v968 = vpop.f32.mrb[0].mxu0
  %969 = vmatprep.mubr.f32.mxu0 0.0
  %970 = vmatmul.mubr.f32.gmra.mrb[0].mxu0 %v615
  %v971 = vpop.f32.mrb[0].mxu0
  %v972 = vadd.f32 %v392, %v971
  %v973 = vpop.f32.mrb[0].mxu0
  %974 = vmatprep.mubr.f32.mxu0 0.0
  %975 = vmatmul.mubr.f32.gmra.mrb[0].mxu0 %v618
  %v976 = vpop.f32.mrb[0].mxu0
  %v977 = vadd.f32 %v397, %v976
  %v978 = vpop.f32.mrb[0].mxu0
  %979 = vmatprep.mubr.f32.mxu0 0.0
  %980 = vmatmul.mubr.f32.gmra.mrb[0].mxu0 %v621
  %v981 = vpop.f32.mrb[0].mxu0
  %v982 = vadd.f32 %v402, %v981
  %v983 = vpop.f32.mrb[0].mxu0
  %984 = vmatprep.mubr.f32.mxu0 0.0
  %985 = vmatmul.mubr.f32.gmra.mrb[0].mxu0 %v624
  %v986 = vpop.f32.mrb[0].mxu0
  %v987 = vadd.f32 %v407, %v986
  %v988 = vpop.f32.mrb[0].mxu0
  %989 = vmatprep.mubr.f32.mxu0 0.0
  %990 = vmatmul.mubr.f32.gmra.mrb[0].mxu0 %v627
  %v991 = vpop.f32.mrb[0].mxu0
  %v992 = vadd.f32 %v412, %v991
  %v993 = vpop.f32.mrb[0].mxu0
  %994 = vmatprep.mubr.f32.mxu0 0.0
  %995 = vmatmul.mubr.f32.gmra.mrb[0].mxu0 %v630
  %v996 = vpop.f32.mrb[0].mxu0
  %v997 = vadd.f32 %v417, %v996
  %v998 = vpop.f32.mrb[0].mxu0
  %999 = vmatprep.mubr.f32.mxu0 0.0
  %1000 = vmatmul.mubr.f32.gmra.mrb[0].mxu0 %v633
  %v1001 = vpop.f32.mrb[0].mxu0
  %v1002 = vadd.f32 %v422, %v1001
  %v1003 = vpop.f32.mrb[0].mxu0
  %1004 = vmatprep.mubr.f32.mxu0 0.0
  %1005 = vmatmul.mubr.f32.gmra.mrb[0].mxu0 %v636
  %v1006 = vpop.f32.mrb[0].mxu0
  %v1007 = vadd.f32 %v427, %v1006
  %v1008 = vpop.f32.mrb[0].mxu0
  %1009 = vmatprep.mubr.f32.mxu0 0.0
  %1010 = vmatmul.mubr.f32.gmra.mrb[0].mxu0 %v639
  %v1011 = vpop.f32.mrb[0].mxu0
  %v1012 = vadd.f32 %v432, %v1011
  %v1013 = vpop.f32.mrb[0].mxu0
  %1014 = vmatprep.mubr.f32.mxu0 0.0
  %1015 = vmatmul.mubr.f32.gmra.mrb[0].mxu0 %v642
  %v1016 = vpop.f32.mrb[0].mxu0
  %v1017 = vadd.f32 %v437, %v1016
  %v1018 = vpop.f32.mrb[0].mxu0
  %1019 = vmatprep.mubr.f32.mxu0 0.0
  %1020 = vmatmul.mubr.f32.gmra.mrb[0].mxu0 %v645
  %v1021 = vpop.f32.mrb[0].mxu0
  %v1022 = vadd.f32 %v442, %v1021
  %v1023 = vpop.f32.mrb[0].mxu0
  %1024 = vmatprep.mubr.f32.mxu0 0.0
  %1025 = vmatmul.mubr.f32.gmra.mrb[0].mxu0 %v648
  %v1026 = vpop.f32.mrb[0].mxu0
  %v1027 = vadd.f32 %v447, %v1026
  %v1028 = vpop.f32.mrb[0].mxu0
  %1029 = vmatprep.mubr.f32.mxu0 0.0
  %1030 = vmatmul.mubr.f32.gmra.mrb[0].mxu0 %v651
  %v1031 = vpop.f32.mrb[0].mxu0
  %v1032 = vadd.f32 %v452, %v1031
  %v1033 = vpop.f32.mrb[0].mxu0
  %1034 = vmatprep.mubr.f32.mxu0 0.0
  %1035 = vmatmul.mubr.f32.gmra.mrb[0].mxu0 %v654
  %v1036 = vpop.f32.mrb[0].mxu0
  %v1037 = vadd.f32 %v457, %v1036
  %v1038 = vpop.f32.mrb[0].mxu0
  %1039 = vmatprep.mubr.f32.mxu0 0.0
  %1040 = vmatmul.mubr.f32.gmra.mrb[0].mxu0 %v657
  %v1041 = vpop.f32.mrb[0].mxu0
  %v1042 = vadd.f32 %v462, %v1041
  %v1043 = vpop.f32.mrb[0].mxu0
  %1044 = vmatprep.mubr.f32.mxu0 0.0
  %1045 = vmatmul.mubr.f32.gmra.mrb[0].mxu0 %v660
  %v1046 = vpop.f32.mrb[0].mxu0
  %v1047 = vadd.f32 %v467, %v1046
  %v1048 = vpop.f32.mrb[0].mxu0
  %1049 = vdwg.mxu0
  %vm1050 = vcmask 15360
  %v1051 = vsel %vm1050, %v732, -inf
  %v1052 = vsel %vm1050, %v752, -inf
  %v1053 = vmax.f32 %v1051, %v1052
  %v1054 = vsel %vm1050, %v772, -inf
  %v1055 = vmax.f32 %v1053, %v1054
  %v1056 = vsel %vm1050, %v792, -inf
  %v1057 = vmax.f32 %v1055, %v1056
  %v1058 = vsel %vm1050, %v812, -inf
  %v1059 = vmax.f32 %v1057, %v1058
  %v1060 = vsel %vm1050, %v832, -inf
  %v1061 = vmax.f32 %v1059, %v1060
  %v1062 = vsel %vm1050, %v852, -inf
  %v1063 = vmax.f32 %v1061, %v1062
  %v1064 = vsel %vm1050, %v872, -inf
  %v1065 = vmax.f32 %v1063, %v1064
  %v1066 = vsel %vm1050, %v892, -inf
  %v1067 = vmax.f32 %v1065, %v1066
  %v1068 = vsel %vm1050, %v912, -inf
  %v1069 = vmax.f32 %v1067, %v1068
  %v1070 = vsel %vm1050, %v932, -inf
  %v1071 = vmax.f32 %v1069, %v1070
  %v1072 = vsel %vm1050, %v952, -inf
  %v1073 = vmax.f32 %v1071, %v1072
  %v1074 = vsel %vm1050, %v972, -inf
  %v1075 = vmax.f32 %v1073, %v1074
  %v1076 = vsel %vm1050, %v992, -inf
  %v1077 = vmax.f32 %v1075, %v1076
  %v1078 = vsel %vm1050, %v1012, -inf
  %v1079 = vmax.f32 %v1077, %v1078
  %v1080 = vsel %vm1050, %v1032, -inf
  %v1081 = vmax.f32 %v1079, %v1080
  %v1082 = vsel %vm1050, %v737, -inf
  %v1083 = vsel %vm1050, %v757, -inf
  %v1084 = vmax.f32 %v1082, %v1083
  %v1085 = vsel %vm1050, %v777, -inf
  %v1086 = vmax.f32 %v1084, %v1085
  %v1087 = vsel %vm1050, %v797, -inf
  %v1088 = vmax.f32 %v1086, %v1087
  %v1089 = vsel %vm1050, %v817, -inf
  %v1090 = vmax.f32 %v1088, %v1089
  %v1091 = vsel %vm1050, %v837, -inf
  %v1092 = vmax.f32 %v1090, %v1091
  %v1093 = vsel %vm1050, %v857, -inf
  %v1094 = vmax.f32 %v1092, %v1093
  %v1095 = vsel %vm1050, %v877, -inf
  %v1096 = vmax.f32 %v1094, %v1095
  %v1097 = vsel %vm1050, %v897, -inf
  %v1098 = vmax.f32 %v1096, %v1097
  %v1099 = vsel %vm1050, %v917, -inf
  %v1100 = vmax.f32 %v1098, %v1099
  %v1101 = vsel %vm1050, %v937, -inf
  %v1102 = vmax.f32 %v1100, %v1101
  %v1103 = vsel %vm1050, %v957, -inf
  %v1104 = vmax.f32 %v1102, %v1103
  %v1105 = vsel %vm1050, %v977, -inf
  %v1106 = vmax.f32 %v1104, %v1105
  %v1107 = vsel %vm1050, %v997, -inf
  %v1108 = vmax.f32 %v1106, %v1107
  %v1109 = vsel %vm1050, %v1017, -inf
  %v1110 = vmax.f32 %v1108, %v1109
  %v1111 = vsel %vm1050, %v1037, -inf
  %v1112 = vmax.f32 %v1110, %v1111
  %v1113 = vsel %vm1050, %v742, -inf
  %v1114 = vsel %vm1050, %v762, -inf
  %v1115 = vmax.f32 %v1113, %v1114
  %v1116 = vsel %vm1050, %v782, -inf
  %v1117 = vmax.f32 %v1115, %v1116
  %v1118 = vsel %vm1050, %v802, -inf
  %v1119 = vmax.f32 %v1117, %v1118
  %v1120 = vsel %vm1050, %v822, -inf
  %v1121 = vmax.f32 %v1119, %v1120
  %v1122 = vsel %vm1050, %v842, -inf
  %v1123 = vmax.f32 %v1121, %v1122
  %v1124 = vsel %vm1050, %v862, -inf
  %v1125 = vmax.f32 %v1123, %v1124
  %v1126 = vsel %vm1050, %v882, -inf
  %v1127 = vmax.f32 %v1125, %v1126
  %v1128 = vsel %vm1050, %v902, -inf
  %v1129 = vmax.f32 %v1127, %v1128
  %v1130 = vsel %vm1050, %v922, -inf
  %v1131 = vmax.f32 %v1129, %v1130
  %v1132 = vsel %vm1050, %v942, -inf
  %v1133 = vmax.f32 %v1131, %v1132
  %v1134 = vsel %vm1050, %v962, -inf
  %v1135 = vmax.f32 %v1133, %v1134
  %v1136 = vsel %vm1050, %v982, -inf
  %v1137 = vmax.f32 %v1135, %v1136
  %v1138 = vsel %vm1050, %v1002, -inf
  %v1139 = vmax.f32 %v1137, %v1138
  %v1140 = vsel %vm1050, %v1022, -inf
  %v1141 = vmax.f32 %v1139, %v1140
  %v1142 = vsel %vm1050, %v1042, -inf
  %v1143 = vmax.f32 %v1141, %v1142
  %v1144 = vsel %vm1050, %v747, -inf
  %v1145 = vsel %vm1050, %v767, -inf
  %v1146 = vmax.f32 %v1144, %v1145
  %v1147 = vsel %vm1050, %v787, -inf
  %v1148 = vmax.f32 %v1146, %v1147
  %v1149 = vsel %vm1050, %v807, -inf
  %v1150 = vmax.f32 %v1148, %v1149
  %v1151 = vsel %vm1050, %v827, -inf
  %v1152 = vmax.f32 %v1150, %v1151
  %v1153 = vsel %vm1050, %v847, -inf
  %v1154 = vmax.f32 %v1152, %v1153
  %v1155 = vsel %vm1050, %v867, -inf
  %v1156 = vmax.f32 %v1154, %v1155
  %v1157 = vsel %vm1050, %v887, -inf
  %v1158 = vmax.f32 %v1156, %v1157
  %v1159 = vsel %vm1050, %v907, -inf
  %v1160 = vmax.f32 %v1158, %v1159
  %v1161 = vsel %vm1050, %v927, -inf
  %v1162 = vmax.f32 %v1160, %v1161
  %v1163 = vsel %vm1050, %v947, -inf
  %v1164 = vmax.f32 %v1162, %v1163
  %v1165 = vsel %vm1050, %v967, -inf
  %v1166 = vmax.f32 %v1164, %v1165
  %v1167 = vsel %vm1050, %v987, -inf
  %v1168 = vmax.f32 %v1166, %v1167
  %v1169 = vsel %vm1050, %v1007, -inf
  %v1170 = vmax.f32 %v1168, %v1169
  %v1171 = vsel %vm1050, %v1027, -inf
  %v1172 = vmax.f32 %v1170, %v1171
  %v1173 = vsel %vm1050, %v1047, -inf
  %v1174 = vmax.f32 %v1172, %v1173
  %v1175 = vld [vmem:[%s3] sm:$0xff]
  %v1176 = vld [vmem:[%s4] sm:$0xff]
  %1178 = vset.pattern.permute.xlu0 0
  %1179 = vperm.xlu0 %1178, %v1176
  %v1180 = vpop.permute.xlu0 %1179
  %vm1182 = vcmask 261120
  %v1184 = vsel %vm1182, %v1175, 0
  %1186 = vmatprep.subr.mxu0 0.0
  %1187 = vmatpush1.msra.mxu0 %v1081
  %1188 = vmatprep.subr.mxu0 0.0
  %1189 = vmatpush1.msra.mxu0 %v1112
  %1190 = vmatprep.subr.mxu0 0.0
  %1191 = vmatpush1.msra.mxu0 %v1143
  %1192 = vmatprep.subr.mxu0 0.0
  %1193 = vmatpush1.msra.mxu0 %v1174
  %1194 = vmatprep.subr.mxu0 0.0
  %1195 = vmatpush1.msra.mxu0 0.0
  %1196 = vmatprep.subr.mxu0 0.0
  %1197 = vmatpush1.msra.mxu0 0.0
  %1198 = vmatprep.subr.mxu0 0.0
  %1199 = vmatpush1.msra.mxu0 0.0
  %1200 = vmatprep.subr.mxu0 0.0
  %1201 = vmatpush1.msra.mxu0 0.0
  %1202 = vmatprep.subr.mxu0 0.0
  %1203 = vmatpush1.msra.mxu0 0.0
  %1204 = vmatprep.subr.mxu0 0.0
  %1205 = vmatpush1.msra.mxu0 0.0
  %1206 = vmatprep.subr.mxu0 0.0
  %1207 = vmatpush1.msra.mxu0 0.0
  %1208 = vmatprep.subr.mxu0 0.0
  %1209 = vmatpush1.msra.mxu0 0.0
  %1210 = vmatprep.subr.mxu0 0.0
  %1211 = vmatpush1.msra.mxu0 0.0
  %1212 = vmatprep.subr.mxu0 0.0
  %1213 = vmatpush1.msra.mxu0 0.0
  %1214 = vmatprep.subr.mxu0 0.0
  %1215 = vmatpush1.msra.mxu0 0.0
  %1216 = vmatprep.subr.mxu0 0.0
  %1217 = vmatpush1.msra.mxu0 0.0
  %1218 = vmatprep.subr.mxu0 0.0
  %1219 = vmatpush1.msra.mxu0 0.0
  %1220 = vmatprep.subr.mxu0 0.0
  %1221 = vmatpush1.msra.mxu0 0.0
  %1222 = vmatprep.subr.mxu0 0.0
  %1223 = vmatpush1.msra.mxu0 0.0
  %1224 = vmatprep.subr.mxu0 0.0
  %1225 = vmatpush1.msra.mxu0 0.0
  %1226 = vmatprep.subr.mxu0 0.0
  %1227 = vmatpush1.msra.mxu0 0.0
  %1228 = vmatprep.subr.mxu0 0.0
  %1229 = vmatpush1.msra.mxu0 0.0
  %1230 = vmatprep.subr.mxu0 0.0
  %1231 = vmatpush1.msra.mxu0 0.0
  %1232 = vmatprep.subr.mxu0 0.0
  %1233 = vmatpush1.msra.mxu0 0.0
  %1234 = vmatprep.subr.mxu0 0.0
  %1235 = vmatpush1.msra.mxu0 0.0
  %1236 = vmatprep.subr.mxu0 0.0
  %1237 = vmatpush1.msra.mxu0 0.0
  %1238 = vmatprep.subr.mxu0 0.0
  %1239 = vmatpush1.msra.mxu0 0.0
  %1240 = vmatprep.subr.mxu0 0.0
  %1241 = vmatpush1.msra.mxu0 0.0
  %1242 = vmatprep.subr.mxu0 0.0
  %1243 = vmatpush1.msra.mxu0 0.0
  %1244 = vmatprep.subr.mxu0 0.0
  %1245 = vmatpush1.msra.mxu0 0.0
  %1246 = vmatprep.subr.mxu0 0.0
  %1247 = vmatpush1.msra.mxu0 0.0
  %1248 = vmatprep.subr.mxu0 0.0
  %1249 = vmatpush1.msra.mxu0 0.0
  %1250 = vmatprep.mubr.f32.mxu0 0.0
  %1251 = vmatmul.mubr.f32.gmra.mrb[0].mxu0 %v1184
  %v1252 = vpop.f32.mrb[0].mxu0
  %v1253 = vadd.f32 %v1180, %v1252
  %v1254 = vpop.f32.mrb[0].mxu0
  %1255 = vdwg.mxu0
  %1256 = vst.msk [vmem:[%s5] sm:$0xff] %vm1050, %v1253
  // Predicated region
  $region22: #{tpu_custom_call.1} parent=0 // pred_check
    _
  $region23: #{tpu_custom_call.1} parent=0 // pred_check_branch
    %1258 = sbr.rel (0) target = $region25
  $region24: #{tpu_custom_call.1} parent=0 // pred_region
    _
  $region25: #{tpu_custom_call.1} parent=0 // pred_fallthru
    _
  // Predicated region
  $region26: #{tpu_custom_call.1} parent=0 // pred_check
    _
  $region27: #{tpu_custom_call.1} parent=0 // pred_check_branch
    %1260 = sbr.rel (0) target = $region29
  $region28: #{tpu_custom_call.1} parent=0 // pred_region
    _
  $region29: #{tpu_custom_call.1} parent=0 // pred_fallthru
    _

</llo_original>
